<compile_context>
chip_gen: v6e
topology: v6e:2x2x1
jax: 0.10.0
libtpu: 0.0.40
codegen_flags: <defaults>
</compile_context>

<pallas_src>
import numpy as np
import jax
import jax.numpy as jnp
from jax.experimental import pallas as pl
from jax.experimental.pallas import tpu as pltpu

_LANES = 128


def _build_face_params(pts8: np.ndarray):
    """Replicates RotatedBBox.__init__ geometry in numpy (float32)."""
    assert pts8.shape == (8, 3)
    faces = np.array([[0, 1, 2], [4, 3, 2], [5, 2, 1],
                      [6, 1, 0], [7, 0, 3], [4, 5, 6]])
    pts0, pts1, pts2 = pts8[faces.T]            # each (6, 3)
    vecs1, vecs2 = pts1 - pts0, pts2 - pts0
    normals = np.stack([np.cross(u, v) for u, v in zip(vecs1, vecs2)], axis=0)
    return pts0.astype(np.float32), normals.astype(np.float32)


def _make_kernel(origins_np, normals_np, outside):
    # Face origins / normals are 6x3 floats -> bake as compile-time constants.
    o = [[float(origins_np[f, c]) for c in range(3)] for f in range(6)]
    n = [[float(normals_np[f, c]) for c in range(3)] for f in range(6)]

    def kernel(pts_ref, out_ref):
        # pts_ref: (3, R, 128) f32     out_ref: (R, 128) int8
        x = pts_ref[0]
        y = pts_ref[1]
        z = pts_ref[2]
        res = None
        for f in range(6):
            # Same arithmetic (and summation order) as the reference:
            # normal . (pt - origin).
            d = (n[f][0] * (x - o[f][0])
                 + n[f][1] * (y - o[f][1])
                 + n[f][2] * (z - o[f][2]))
            m = (d <= 0.0) if outside else (d > 0.0)
            if res is None:
                res = m
            else:
                res = (res | m) if outside else (res & m)
        # bool -> i32 -> i8 (explicit two-step cast keeps the lowering simple).
        out_ref[...] = res.astype(jnp.int32).astype(jnp.int8)

    return kernel


def rotated_bbox_forward(pts: jax.Array, origins_np: np.ndarray,
                         normals_np: np.ndarray, outside: bool = False,
                         tile_n: int = 32768) -> jax.Array:
    """pts: (N, 3) float32 -> (N,) bool  (inside / outside test)."""
    N = pts.shape[0]
    rows_per_tile = max(1, tile_n // _LANES)
    n_rows = -(-N // _LANES)                     # ceil(N / 128)
    if n_rows <= rows_per_tile:
        row_block = n_rows                       # single grid step, full block
    else:
        row_block = rows_per_tile                # multiple of 32 -> int8-safe
        n_rows = -(-n_rows // row_block) * row_block
    n_pad = n_rows * _LANES
    grid = (n_rows // row_block,)

    if n_pad != N:
        pts = jnp.pad(pts, ((0, n_pad - N), (0, 0)))
    # Lane-dense layout: coordinate axis leading, points on (sublane, lane).
    pts_t = pts.T.reshape(3, n_rows, _LANES)

    out = pl.pallas_call(
        _make_kernel(origins_np, normals_np, outside),
        out_shape=jax.ShapeDtypeStruct((n_rows, _LANES), jnp.int8),
        grid=grid,
        in_specs=[pl.BlockSpec((3, row_block, _LANES), lambda i: (0, i, 0))],
        out_specs=pl.BlockSpec((row_block, _LANES), lambda i: (i, 0)),
        compiler_params=pltpu.CompilerParams(
            dimension_semantics=("parallel",)),
    )(pts_t)
    return out.reshape(n_pad)[:N].astype(jnp.bool_)


def _reference(pts_np, origins_np, normals_np, outside):
    vecs = pts_np[:, None, :] - origins_np[None, :, :]            # (N, 6, 3)
    dots = np.einsum('nfc,fc->nf', vecs, normals_np)              # (N, 6)
    if outside:
        return np.any(dots <= 0.0, axis=-1)
    return np.all(dots > 0.0, axis=-1)


if __name__ == "__main__":
    # Deterministic rotated unit-cube corners (the 8 bbox points).
    corners = np.array([[x, y, z] for x in (-0.5, 0.5)
                        for y in (-0.5, 0.5)
                        for z in (-0.5, 0.5)], np.float32)
    theta = 0.3
    rot = np.array([[np.cos(theta), -np.sin(theta), 0.0],
                    [np.sin(theta), np.cos(theta), 0.0],
                    [0.0, 0.0, 1.0]], np.float32)
    pts8 = (corners @ rot.T).astype(np.float32)
    origins_np, normals_np = _build_face_params(pts8)

    # Query points (N deliberately not a multiple of 128 to exercise padding).
    key = jax.random.PRNGKey(0)
    N = 200
    query = jax.random.uniform(key, (N, 3), jnp.float32, minval=-1.0, maxval=1.0)

    inside = rotated_bbox_forward(query, origins_np, normals_np, outside=False)
    outs = rotated_bbox_forward(query, origins_np, normals_np, outside=True)
    jax.block_until_ready((inside, outs))

    q_np = np.asarray(query)
    ref_in = _reference(q_np, origins_np, normals_np, outside=False)
    ref_out = _reference(q_np, origins_np, normals_np, outside=True)
    assert np.array_equal(np.asarray(inside), ref_in)
    assert np.array_equal(np.asarray(outs), ref_out)

    print("KERNEL_OK")
</pallas_src>

<mosaic_0001>
module attributes {stable_mosaic.version = 11 : i64} {
  func.func @kernel(%arg0: i32, %arg1: memref<3x2x128xf32, #tpu.memory_space<vmem>>, %arg2: memref<2x128xi8, #tpu.memory_space<vmem>>) attributes {dimension_semantics = [#tpu.dimension_semantics<parallel>], iteration_bounds = array<i64: 1>, scalar_prefetch = 0 : i64, scratch_operands = 0 : i64, tpu.core_type = #tpu.core_type<tc>, window_params = [{transform_indices = @transform_0, window_bounds = array<i64: 3, 2, 128>}, {transform_indices = @transform_1, window_bounds = array<i64: 2, 128>}]} {
    %c0 = arith.constant 0 : index
    %c0_0 = arith.constant 0 : index
    %c0_1 = arith.constant 0 : index
    %0 = vector.load %arg1[%c0, %c0_0, %c0_1] : memref<3x2x128xf32, #tpu.memory_space<vmem>>, vector<1x2x128xf32>
    %1 = vector.shape_cast %0 : vector<1x2x128xf32> to vector<2x128xf32>
    %c1 = arith.constant 1 : index
    %c0_2 = arith.constant 0 : index
    %c0_3 = arith.constant 0 : index
    %2 = vector.load %arg1[%c1, %c0_2, %c0_3] : memref<3x2x128xf32, #tpu.memory_space<vmem>>, vector<1x2x128xf32>
    %3 = vector.shape_cast %2 : vector<1x2x128xf32> to vector<2x128xf32>
    %c2 = arith.constant 2 : index
    %c0_4 = arith.constant 0 : index
    %c0_5 = arith.constant 0 : index
    %4 = vector.load %arg1[%c2, %c0_4, %c0_5] : memref<3x2x128xf32, #tpu.memory_space<vmem>>, vector<1x2x128xf32>
    %5 = vector.shape_cast %4 : vector<1x2x128xf32> to vector<2x128xf32>
    %cst = arith.constant -0.329908133 : f32
    %6 = vector.broadcast %cst : f32 to vector<2x128xf32>
    %7 = arith.subf %1, %6 : vector<2x128xf32>
    %cst_6 = arith.constant -0.955336511 : f32
    %8 = vector.broadcast %cst_6 : f32 to vector<2x128xf32>
    %9 = arith.mulf %8, %7 : vector<2x128xf32>
    %cst_7 = arith.constant -0.625428378 : f32
    %10 = vector.broadcast %cst_7 : f32 to vector<2x128xf32>
    %11 = arith.subf %3, %10 : vector<2x128xf32>
    %cst_8 = arith.constant -0.295520246 : f32
    %12 = vector.broadcast %cst_8 : f32 to vector<2x128xf32>
    %13 = arith.mulf %12, %11 : vector<2x128xf32>
    %14 = arith.addf %9, %13 : vector<2x128xf32>
    %cst_9 = arith.constant -5.000000e-01 : f32
    %15 = vector.broadcast %cst_9 : f32 to vector<2x128xf32>
    %16 = arith.subf %5, %15 : vector<2x128xf32>
    %cst_10 = arith.constant 0.000000e+00 : f32
    %17 = vector.broadcast %cst_10 : f32 to vector<2x128xf32>
    %18 = arith.mulf %17, %16 : vector<2x128xf32>
    %19 = arith.addf %14, %18 : vector<2x128xf32>
    %cst_11 = arith.constant 0.000000e+00 : f32
    %20 = vector.broadcast %cst_11 : f32 to vector<2x128xf32>
    %21 = arith.cmpf ogt, %19, %20 : vector<2x128xf32>
    %cst_12 = arith.constant 0.625428378 : f32
    %22 = vector.broadcast %cst_12 : f32 to vector<2x128xf32>
    %23 = arith.subf %1, %22 : vector<2x128xf32>
    %cst_13 = arith.constant -0.659816265 : f32
    %24 = vector.broadcast %cst_13 : f32 to vector<2x128xf32>
    %25 = arith.mulf %24, %23 : vector<2x128xf32>
    %cst_14 = arith.constant -0.329908133 : f32
    %26 = vector.broadcast %cst_14 : f32 to vector<2x128xf32>
    %27 = arith.subf %3, %26 : vector<2x128xf32>
    %cst_15 = arith.constant -1.25085676 : f32
    %28 = vector.broadcast %cst_15 : f32 to vector<2x128xf32>
    %29 = arith.mulf %28, %27 : vector<2x128xf32>
    %30 = arith.addf %25, %29 : vector<2x128xf32>
    %cst_16 = arith.constant -5.000000e-01 : f32
    %31 = vector.broadcast %cst_16 : f32 to vector<2x128xf32>
    %32 = arith.subf %5, %31 : vector<2x128xf32>
    %cst_17 = arith.constant 0.000000e+00 : f32
    %33 = vector.broadcast %cst_17 : f32 to vector<2x128xf32>
    %34 = arith.mulf %33, %32 : vector<2x128xf32>
    %35 = arith.addf %30, %34 : vector<2x128xf32>
    %cst_18 = arith.constant 0.000000e+00 : f32
    %36 = vector.broadcast %cst_18 : f32 to vector<2x128xf32>
    %37 = arith.cmpf ogt, %35, %36 : vector<2x128xf32>
    %38 = arith.andi %21, %37 : vector<2x128xi1>
    %cst_19 = arith.constant 0.625428378 : f32
    %39 = vector.broadcast %cst_19 : f32 to vector<2x128xf32>
    %40 = arith.subf %1, %39 : vector<2x128xf32>
    %cst_20 = arith.constant -0.295520246 : f32
    %41 = vector.broadcast %cst_20 : f32 to vector<2x128xf32>
    %42 = arith.mulf %41, %40 : vector<2x128xf32>
    %cst_21 = arith.constant -0.329908133 : f32
    %43 = vector.broadcast %cst_21 : f32 to vector<2x128xf32>
    %44 = arith.subf %3, %43 : vector<2x128xf32>
    %cst_22 = arith.constant 0.955336511 : f32
    %45 = vector.broadcast %cst_22 : f32 to vector<2x128xf32>
    %46 = arith.mulf %45, %44 : vector<2x128xf32>
    %47 = arith.addf %42, %46 : vector<2x128xf32>
    %cst_23 = arith.constant 5.000000e-01 : f32
    %48 = vector.broadcast %cst_23 : f32 to vector<2x128xf32>
    %49 = arith.subf %5, %48 : vector<2x128xf32>
    %cst_24 = arith.constant 1.00000012 : f32
    %50 = vector.broadcast %cst_24 : f32 to vector<2x128xf32>
    %51 = arith.mulf %50, %49 : vector<2x128xf32>
    %52 = arith.addf %47, %51 : vector<2x128xf32>
    %cst_25 = arith.constant 0.000000e+00 : f32
    %53 = vector.broadcast %cst_25 : f32 to vector<2x128xf32>
    %54 = arith.cmpf ogt, %52, %53 : vector<2x128xf32>
    %55 = arith.andi %38, %54 : vector<2x128xi1>
    %cst_26 = arith.constant 0.329908133 : f32
    %56 = vector.broadcast %cst_26 : f32 to vector<2x128xf32>
    %57 = arith.subf %1, %56 : vector<2x128xf32>
    %cst_27 = arith.constant 1.25085676 : f32
    %58 = vector.broadcast %cst_27 : f32 to vector<2x128xf32>
    %59 = arith.mulf %58, %57 : vector<2x128xf32>
    %cst_28 = arith.constant 0.625428378 : f32
    %60 = vector.broadcast %cst_28 : f32 to vector<2x128xf32>
    %61 = arith.subf %3, %60 : vector<2x128xf32>
    %cst_29 = arith.constant -0.659816265 : f32
    %62 = vector.broadcast %cst_29 : f32 to vector<2x128xf32>
    %63 = arith.mulf %62, %61 : vector<2x128xf32>
    %64 = arith.addf %59, %63 : vector<2x128xf32>
    %cst_30 = arith.constant -5.000000e-01 : f32
    %65 = vector.broadcast %cst_30 : f32 to vector<2x128xf32>
    %66 = arith.subf %5, %65 : vector<2x128xf32>
    %cst_31 = arith.constant 0.000000e+00 : f32
    %67 = vector.broadcast %cst_31 : f32 to vector<2x128xf32>
    %68 = arith.mulf %67, %66 : vector<2x128xf32>
    %69 = arith.addf %64, %68 : vector<2x128xf32>
    %cst_32 = arith.constant 0.000000e+00 : f32
    %70 = vector.broadcast %cst_32 : f32 to vector<2x128xf32>
    %71 = arith.cmpf ogt, %69, %70 : vector<2x128xf32>
    %72 = arith.andi %55, %71 : vector<2x128xi1>
    %cst_33 = arith.constant 0.329908133 : f32
    %73 = vector.broadcast %cst_33 : f32 to vector<2x128xf32>
    %74 = arith.subf %1, %73 : vector<2x128xf32>
    %cst_34 = arith.constant -0.295520246 : f32
    %75 = vector.broadcast %cst_34 : f32 to vector<2x128xf32>
    %76 = arith.mulf %75, %74 : vector<2x128xf32>
    %cst_35 = arith.constant 0.625428378 : f32
    %77 = vector.broadcast %cst_35 : f32 to vector<2x128xf32>
    %78 = arith.subf %3, %77 : vector<2x128xf32>
    %cst_36 = arith.constant 0.955336511 : f32
    %79 = vector.broadcast %cst_36 : f32 to vector<2x128xf32>
    %80 = arith.mulf %79, %78 : vector<2x128xf32>
    %81 = arith.addf %76, %80 : vector<2x128xf32>
    %cst_37 = arith.constant 5.000000e-01 : f32
    %82 = vector.broadcast %cst_37 : f32 to vector<2x128xf32>
    %83 = arith.subf %5, %82 : vector<2x128xf32>
    %cst_38 = arith.constant -1.000000e+00 : f32
    %84 = vector.broadcast %cst_38 : f32 to vector<2x128xf32>
    %85 = arith.mulf %84, %83 : vector<2x128xf32>
    %86 = arith.addf %81, %85 : vector<2x128xf32>
    %cst_39 = arith.constant 0.000000e+00 : f32
    %87 = vector.broadcast %cst_39 : f32 to vector<2x128xf32>
    %88 = arith.cmpf ogt, %86, %87 : vector<2x128xf32>
    %89 = arith.andi %72, %88 : vector<2x128xi1>
    %cst_40 = arith.constant 0.625428378 : f32
    %90 = vector.broadcast %cst_40 : f32 to vector<2x128xf32>
    %91 = arith.subf %1, %90 : vector<2x128xf32>
    %cst_41 = arith.constant -0.955336511 : f32
    %92 = vector.broadcast %cst_41 : f32 to vector<2x128xf32>
    %93 = arith.mulf %92, %91 : vector<2x128xf32>
    %cst_42 = arith.constant -0.329908133 : f32
    %94 = vector.broadcast %cst_42 : f32 to vector<2x128xf32>
    %95 = arith.subf %3, %94 : vector<2x128xf32>
    %cst_43 = arith.constant -0.295520246 : f32
    %96 = vector.broadcast %cst_43 : f32 to vector<2x128xf32>
    %97 = arith.mulf %96, %95 : vector<2x128xf32>
    %98 = arith.addf %93, %97 : vector<2x128xf32>
    %cst_44 = arith.constant -5.000000e-01 : f32
    %99 = vector.broadcast %cst_44 : f32 to vector<2x128xf32>
    %100 = arith.subf %5, %99 : vector<2x128xf32>
    %cst_45 = arith.constant 0.000000e+00 : f32
    %101 = vector.broadcast %cst_45 : f32 to vector<2x128xf32>
    %102 = arith.mulf %101, %100 : vector<2x128xf32>
    %103 = arith.addf %98, %102 : vector<2x128xf32>
    %cst_46 = arith.constant 0.000000e+00 : f32
    %104 = vector.broadcast %cst_46 : f32 to vector<2x128xf32>
    %105 = arith.cmpf ogt, %103, %104 : vector<2x128xf32>
    %106 = arith.andi %89, %105 : vector<2x128xi1>
    %107 = arith.extui %106 : vector<2x128xi1> to vector<2x128xi32>
    %108 = arith.trunci %107 : vector<2x128xi32> to vector<2x128xi8>
    %c0_47 = arith.constant 0 : index
    %c0_48 = arith.constant 0 : index
    %109 = vector.load %arg2[%c0_47, %c0_48] : memref<2x128xi8, #tpu.memory_space<vmem>>, vector<2x128xi8>
    tpu.vector_store %arg2[%c0_47, %c0_48], %108 {strides = array<i32>} : memref<2x128xi8, #tpu.memory_space<vmem>>, vector<2x128xi8>,
    return
  }
  func.func @transform_0(%arg0: i32) -> (i32, i32, i32) {
    %c0_i32 = arith.constant 0 : i32
    %c0_i32_0 = arith.constant 0 : i32
    %c0_i32_1 = arith.constant 0 : i32
    return %c0_i32, %arg0, %c0_i32_0 : i32, i32, i32
  }
  func.func @transform_1(%arg0: i32) -> (i32, i32) {
    %c0_i32 = arith.constant 0 : i32
    %c0_i32_0 = arith.constant 0 : i32
    return %arg0, %c0_i32 : i32, i32
  }
}

</mosaic_0001>

<llo_original>
// kernel: tpu_custom_call.1
$region0: #{tpu_custom_call.1}
  #allocation0 [shape = 'u32[]', space=smem, size = 0x4, offset = 0x4, fixed_abs, tag = 'smem constant byte address 0x4 - core index']
  #allocation1 [shape = 'u32[144,128]{1,0:T(1,128)}', space=vmem, size = 0x12000, scoped, tag = 'internal scratch']
  %s0 = inlined_call_operand.hbm [shape: f32[3,2,128], index: 0, kind: input, shape index: {}]
  %s1 = inlined_call_operand.hbm [shape: s8[2,128], index: 1, kind: output, shape index: {}]
  %s2 = sld [smem:[#allocation0]]
  $region18: #{tpu_custom_call.1} parent=0
    _
  %s4 = ssub.s32 1, %s2
  %s5 = scalar_select 0, %s4, %s2
  $region1: #{tpu_custom_call.1} parent=0
    #allocation2 [shape = 'u8[3072]{0}', space=vmem, size = 0xc00, scoped, tag = 'input window, operand 0, single buffered']
    #allocation3 [shape = 's32[1]{0}', space=sflag, size = 0x4, scoped, tag = 'scoped memory for tpu_custom_call.1']
    #allocation4 [shape = 's32[1]{0}', space=sflag, size = 0x4, scoped, tag = 'scoped memory for tpu_custom_call.1']
    #allocation5 [shape = 'u8[512]{0}', space=vmem, size = 0x400, scoped, tag = 'output window, operand 0, single buffered']
    %6 = vsyncpa [#allocation3], 0
    %7 = vsyncpa [#allocation4], 0
    // Predicated region
    $region2: #{tpu_custom_call.1} parent=1 // pred_check
      _
    $region3: #{tpu_custom_call.1} parent=1 // pred_check_branch
      %9 = sbr.rel (0) target = $region5
    $region4: #{tpu_custom_call.1} parent=1 // pred_region
      %s11 = ssub.s32 96, 96
      %12 = vsyncadd [#allocation3], %s11
      %s13 = sshll.u32 [#allocation2], 4
      %s14 = int_to_ptr.vmem [resolvable:$true] %s13
      %19 = dma.hbm_to_vmem [thread:$0]  %s0, 96, %s14, [#allocation3], 32, 32, 2
    $region5: #{tpu_custom_call.1} parent=1 // pred_fallthru
      _
    // Predicated region
    $region6: #{tpu_custom_call.1} parent=1 // pred_check
      _
    $region7: #{tpu_custom_call.1} parent=1 // pred_check_branch
      %21 = sbr.rel (0) target = $region9
    $region8: #{tpu_custom_call.1} parent=1 // pred_region
      %22 = dma.done [#allocation3], 96
    $region9: #{tpu_custom_call.1} parent=1 // pred_fallthru
      _
    %v25 = vld [vmem:[#allocation2] sm:$0x3]
    %s26 = scalar_lea.vmem [#allocation2], 2
    %v27 = vld [vmem:[%s26] sm:$0x3]
    %s28 = scalar_lea.vmem [#allocation2], 4
    %v29 = vld [vmem:[%s28] sm:$0x3]
    %v30 = vsub.f32 %v25, -0.32990813
    %v31 = vmul.f32 %v30, -0.9553365
    %v32 = vsub.f32 %v27, -0.6254284
    %v33 = vmul.f32 %v32, -0.29552025
    %v34 = vadd.f32 %v31, %v33
    %v35 = vsub.f32 %v29, -0.5
    %v36 = vmul.f32 %v35, 0.0
    %v37 = vadd.f32 %v34, %v36
    %vm38 = vcmp.gt.f32.partialorder %v37, 0.0
    %v39 = vsub.f32 %v25, 0.6254284
    %v40 = vmul.f32 %v39, -0.65981627
    %v41 = vsub.f32 %v27, -0.32990813
    %v42 = vmul.f32 %v41, -1.2508568
    %v43 = vadd.f32 %v40, %v42
    %v44 = vadd.f32 %v43, %v36
    %vm45 = vcmp.gt.f32.partialorder %v44, 0.0
    %vm46 = vmand %vm38, %vm45
    %v47 = vmul.f32 %v39, -0.29552025
    %v48 = vmul.f32 %v41, 0.9553365
    %v49 = vadd.f32 %v47, %v48
    %v50 = vsub.f32 %v29, 0.5
    %v51 = vmul.f32 %v50, 1.0000001
    %v52 = vadd.f32 %v49, %v51
    %vm53 = vcmp.gt.f32.partialorder %v52, 0.0
    %vm54 = vmand %vm46, %vm53
    %v55 = vsub.f32 %v25, 0.32990813
    %v56 = vmul.f32 %v55, 1.2508568
    %v57 = vsub.f32 %v27, 0.6254284
    %v58 = vmul.f32 %v57, -0.65981627
    %v59 = vadd.f32 %v56, %v58
    %v60 = vadd.f32 %v59, %v36
    %vm61 = vcmp.gt.f32.partialorder %v60, 0.0
    %vm62 = vmand %vm54, %vm61
    %v63 = vmul.f32 %v55, -0.29552025
    %v64 = vmul.f32 %v57, 0.9553365
    %v65 = vadd.f32 %v63, %v64
    %v66 = vmul.f32 %v50, -1.0
    %v67 = vadd.f32 %v65, %v66
    %vm68 = vcmp.gt.f32.partialorder %v67, 0.0
    %vm69 = vmand %vm62, %vm68
    %v70 = vmul.f32 %v39, -0.9553365
    %v71 = vmul.f32 %v41, -0.29552025
    %v72 = vadd.f32 %v70, %v71
    %v73 = vadd.f32 %v72, %v36
    %vm74 = vcmp.gt.f32.partialorder %v73, 0.0
    %vm75 = vmand %vm69, %vm74
    %vm76 = vmpackc.low %vm75, %vm75
    %vm77 = vmpackc.even %vm76, %vm76
    %v78 = vsel %vm77, 16843009, 0
    %vm79 = vcmask 1040384
    %vm80 = vsmask.f32 256
    %vm81 = vmand %vm79, %vm80
    %v82 = vld [vmem:[#allocation5] sm:$0x1]
    %v83 = vsel %vm81, %v78, %v82
    %84 = vst [vmem:[#allocation5] sm:$0x1] %v83
    // Predicated region
    $region10: #{tpu_custom_call.1} parent=1 // pred_check
      _
    $region11: #{tpu_custom_call.1} parent=1 // pred_check_branch
      %86 = sbr.rel (0) target = $region13
    $region12: #{tpu_custom_call.1} parent=1 // pred_region
      %s88 = ssub.s32 16, 16
      %89 = vsyncadd [#allocation4], %s88
      %s91 = sshll.u32 [#allocation5], 4
      %s92 = int_to_ptr.vmem [resolvable:$true] %s91
      %94 = dma.vmem_to_hbm [thread:$0]  %s92, 16, %s1, [#allocation4]
    $region13: #{tpu_custom_call.1} parent=1 // pred_fallthru
      _
    // Predicated region
    $region14: #{tpu_custom_call.1} parent=1 // pred_check
      _
    $region15: #{tpu_custom_call.1} parent=1 // pred_check_branch
      %96 = sbr.rel (0) target = $region17
    $region16: #{tpu_custom_call.1} parent=1 // pred_region
      %97 = dma.done [#allocation4], 16
    $region17: #{tpu_custom_call.1} parent=1 // pred_fallthru
      _
    %98 = vsyncpa [#allocation3], 1
    %99 = vsyncpa [#allocation4], 1

</llo_original>
